<compile_context>
chip_gen: v6e
topology: v6e:2x2x1
jax: 0.10.0
libtpu: 0.0.40
codegen_flags: <defaults>
</compile_context>

<pallas_src>
import functools

import jax
import jax.numpy as jnp
from jax.experimental import pallas as pl
from jax.experimental.pallas import tpu as pltpu


def conv1x1_affine_kernel(x_ref, w_ref, b_ref, o_ref):
    # x_ref: (C_in, tn)  zero-padded input pixels, flattened (Hp*Wp) on the lane axis
    # w_ref: (C_out, C_in) folded weight = conv_weight / 6
    # b_ref: (C_out, 1)    folded bias   = (conv_bias + 3) / 6
    # o_ref: (C_out, tn)
    x = x_ref[...]
    w = w_ref[...]
    # out[c, p] = sum_k w[c, k] * x[k, p] + b[c]
    # C_in broadcast FMAs on the VPU; the w column broadcast is a single replicated
    # vreg and the x row sublane-broadcast is XLU work well under the DMA roofline.
    acc = w[:, 0:1] * x[0:1, :]
    for k in range(1, x_ref.shape[0]):
        acc = acc + w[:, k:k + 1] * x[k:k + 1, :]
    # TODO(synk): torch.clamp(v2) with no min/max bounds raises in PyTorch; treated as
    # identity here (no clamp applied), matching the literal reference math.
    o_ref[...] = acc + b_ref[...]


def _round_up(a, b):
    return ((a + b - 1) // b) * b


@jax.jit
def model_forward(x, weight, bias):
    """x: (1, 3, H, W) f32; weight: (8, 3) (1x1 conv kernel squeezed); bias: (8,)."""
    N, C_in, H, W = x.shape
    C_out = weight.shape[0]
    assert N == 1, "kernel written for batch 1 (matches reference module input)"
    assert C_in == weight.shape[1]

    # Fold the (+3)/6 affine into the tiny parameters (24 + 8 floats).
    # (Note: changes rounding order vs (conv + 3) / 6; differences are << 1e-5 in f32.)
    w_eff = (weight / 6.0).astype(jnp.float32)             # (C_out, C_in)
    b_eff = ((bias + 3.0) / 6.0).astype(jnp.float32)       # (C_out,)

    # Zero-pad spatially (this IS the conv padding for a 1x1 kernel) and flatten.
    # Under jit this pad + reshape is one fused pass producing the kernel's input slab.
    Hp, Wp = H + 2, W + 2
    npix = Hp * Wp
    x_flat = jnp.pad(x[0], ((0, 0), (1, 1), (1, 1))).reshape(C_in, npix)

    # Lane tile: big (amortize per-step overhead) but keep >= 2 "parallel" grid steps
    # for v7x's two TensorCores whenever the image is large enough.
    CAP = 65536                                             # lanes per step cap
    min_steps = 2 if npix > 256 else 1
    steps = max(min_steps, pl.cdiv(npix, CAP))
    tn = _round_up(pl.cdiv(npix, steps), 128)
    grid = pl.cdiv(npix, tn)                                # ragged last block is masked

    out_flat = pl.pallas_call(
        conv1x1_affine_kernel,
        out_shape=jax.ShapeDtypeStruct((C_out, npix), jnp.float32),
        grid=(grid,),
        in_specs=[
            pl.BlockSpec((C_in, tn), lambda i: (0, i)),
            pl.BlockSpec((C_out, C_in), lambda i: (0, 0)),
            pl.BlockSpec((C_out, 1), lambda i: (0, 0)),
        ],
        out_specs=pl.BlockSpec((C_out, tn), lambda i: (0, i)),
        compiler_params=pltpu.CompilerParams(
            dimension_semantics=("parallel",)),
    )(x_flat, w_eff, b_eff.reshape(C_out, 1))

    # Contiguous reshape: free (metadata only) inside the jit fusion.
    return out_flat.reshape(C_out, Hp, Wp)[None]            # (1, C_out, Hp, Wp)


if __name__ == "__main__":
    key = jax.random.PRNGKey(0)
    kx, kw, kb = jax.random.split(key, 3)

    # Shapes implied by the module: batch=1, 3 input channels, 64x64 spatial.
    x1 = jax.random.normal(kx, (1, 3, 64, 64), jnp.float32)
    # Conv2d(3, 8, 1) parameters (weight stored squeezed to (8, 3)), deterministic init.
    weight = jax.random.normal(kw, (8, 3), jnp.float32) * 0.1
    bias = jax.random.normal(kb, (8,), jnp.float32) * 0.1

    out = model_forward(x1, weight, bias)
    jax.block_until_ready(out)

    # Sanity check against a pure-JAX reference of the same math (no clamp applied).
    x_pad = jnp.pad(x1[0], ((0, 0), (1, 1), (1, 1)))
    ref = (jnp.einsum("oc,chw->ohw", weight, x_pad) + bias[:, None, None] + 3.0) / 6.0
    assert out.shape == (1, 8, 66, 66)
    assert jnp.allclose(out[0], ref, atol=1e-5, rtol=1e-5)

    print("KERNEL_OK")
</pallas_src>

<mosaic_0001>
module attributes {stable_mosaic.version = 11 : i64} {
  func.func @conv1x1_affine_kernel(%arg0: i32, %arg1: memref<3x2304xf32, #tpu.memory_space<vmem>>, %arg2: memref<8x3xf32, #tpu.memory_space<vmem>>, %arg3: memref<8x1xf32, #tpu.memory_space<vmem>>, %arg4: memref<8x2304xf32, #tpu.memory_space<vmem>>) attributes {dimension_semantics = [#tpu.dimension_semantics<parallel>], iteration_bounds = array<i64: 2>, scalar_prefetch = 0 : i64, scratch_operands = 0 : i64, tpu.core_type = #tpu.core_type<tc>, window_params = [{transform_indices = @transform_0, window_bounds = array<i64: 3, 2304>}, {pipeline_mode = #tpu.pipeline_mode<synchronous>, transform_indices = @transform_1, window_bounds = array<i64: 8, 3>}, {pipeline_mode = #tpu.pipeline_mode<synchronous>, transform_indices = @transform_2, window_bounds = array<i64: 8, 1>}, {transform_indices = @transform_3, window_bounds = array<i64: 8, 2304>}]} {
    %c0 = arith.constant 0 : index
    %c0_0 = arith.constant 0 : index
    %0 = vector.load %arg1[%c0, %c0_0] : memref<3x2304xf32, #tpu.memory_space<vmem>>, vector<3x2304xf32>
    %c0_1 = arith.constant 0 : index
    %c0_2 = arith.constant 0 : index
    %1 = vector.load %arg2[%c0_1, %c0_2] : memref<8x3xf32, #tpu.memory_space<vmem>>, vector<8x3xf32>
    %2 = vector.extract_strided_slice %1 {offsets = [0, 0], sizes = [8, 1], strides = [1, 1]} : vector<8x3xf32> to vector<8x1xf32>
    %3 = vector.extract_strided_slice %0 {offsets = [0, 0], sizes = [1, 2304], strides = [1, 1]} : vector<3x2304xf32> to vector<1x2304xf32>
    %4 = vector.broadcast %2 : vector<8x1xf32> to vector<8x2304xf32>
    %5 = vector.broadcast %3 : vector<1x2304xf32> to vector<8x2304xf32>
    %6 = arith.mulf %4, %5 : vector<8x2304xf32>
    %7 = vector.extract_strided_slice %1 {offsets = [0, 1], sizes = [8, 1], strides = [1, 1]} : vector<8x3xf32> to vector<8x1xf32>
    %8 = vector.extract_strided_slice %0 {offsets = [1, 0], sizes = [1, 2304], strides = [1, 1]} : vector<3x2304xf32> to vector<1x2304xf32>
    %9 = vector.broadcast %7 : vector<8x1xf32> to vector<8x2304xf32>
    %10 = vector.broadcast %8 : vector<1x2304xf32> to vector<8x2304xf32>
    %11 = arith.mulf %9, %10 : vector<8x2304xf32>
    %12 = arith.addf %6, %11 : vector<8x2304xf32>
    %13 = vector.extract_strided_slice %1 {offsets = [0, 2], sizes = [8, 1], strides = [1, 1]} : vector<8x3xf32> to vector<8x1xf32>
    %14 = vector.extract_strided_slice %0 {offsets = [2, 0], sizes = [1, 2304], strides = [1, 1]} : vector<3x2304xf32> to vector<1x2304xf32>
    %15 = vector.broadcast %13 : vector<8x1xf32> to vector<8x2304xf32>
    %16 = vector.broadcast %14 : vector<1x2304xf32> to vector<8x2304xf32>
    %17 = arith.mulf %15, %16 : vector<8x2304xf32>
    %18 = arith.addf %12, %17 : vector<8x2304xf32>
    %c0_3 = arith.constant 0 : index
    %c0_4 = arith.constant 0 : index
    %19 = vector.load %arg3[%c0_3, %c0_4] : memref<8x1xf32, #tpu.memory_space<vmem>>, vector<8x1xf32>
    %20 = vector.broadcast %19 : vector<8x1xf32> to vector<8x2304xf32>
    %21 = arith.addf %18, %20 : vector<8x2304xf32>
    %c0_5 = arith.constant 0 : index
    %c0_6 = arith.constant 0 : index
    %22 = vector.load %arg4[%c0_5, %c0_6] : memref<8x2304xf32, #tpu.memory_space<vmem>>, vector<8x2304xf32>
    tpu.vector_store %arg4[%c0_5, %c0_6], %21 {strides = array<i32>} : memref<8x2304xf32, #tpu.memory_space<vmem>>, vector<8x2304xf32>,
    return
  }
  func.func @transform_0(%arg0: i32) -> (i32, i32) {
    %c0_i32 = arith.constant 0 : i32
    %c0_i32_0 = arith.constant 0 : i32
    return %c0_i32, %arg0 : i32, i32
  }
  func.func @transform_1(%arg0: i32) -> (i32, i32) {
    %c0_i32 = arith.constant 0 : i32
    %c0_i32_0 = arith.constant 0 : i32
    %c0_i32_1 = arith.constant 0 : i32
    return %c0_i32, %c0_i32_0 : i32, i32
  }
  func.func @transform_2(%arg0: i32) -> (i32, i32) {
    %c0_i32 = arith.constant 0 : i32
    %c0_i32_0 = arith.constant 0 : i32
    %c0_i32_1 = arith.constant 0 : i32
    return %c0_i32, %c0_i32_0 : i32, i32
  }
  func.func @transform_3(%arg0: i32) -> (i32, i32) {
    %c0_i32 = arith.constant 0 : i32
    %c0_i32_0 = arith.constant 0 : i32
    return %c0_i32, %arg0 : i32, i32
  }
}

</mosaic_0001>

<llo_original>
// kernel: model_forward.1
$region0: #{model_forward.1}
  #allocation0 [shape = 'u32[]', space=smem, size = 0x4, offset = 0x4, fixed_abs, tag = 'smem constant byte address 0x4 - core index']
  #allocation1 [shape = 'u32[144,128]{1,0:T(1,128)}', space=vmem, size = 0x12000, scoped, tag = 'internal scratch']
  %s0 = inlined_call_operand.vmem [shape: f32[3,4356], index: 0, kind: input, shape index: {}]
  %s1 = inlined_call_operand.vmem [shape: f32[8,3], index: 1, kind: input, shape index: {}]
  %s2 = inlined_call_operand.vmem [shape: f32[8,1], index: 2, kind: input, shape index: {}]
  %s3 = inlined_call_operand.vmem [shape: f32[8,4356], index: 3, kind: output, shape index: {}]
  %s4 = sld [smem:[#allocation0]]
  $region107: #{model_forward.1} parent=0
    _
  %s6 = ssub.s32 1, %s4
  %s7 = scalar_select 0, %s6, %s4
  $region1: #{model_forward.1} parent=0
    #allocation2 [shape = 'u8[147456]{0}', space=vmem, size = 0x24000, scoped, tag = 'output window, operand 0']
    loop: start=0, step=1, limit=4
    $region2: #{model_forward.1} parent=1 // loop_pre_header
      _
    $region3: #{model_forward.1} parent=1 // loop_header
      %s9 = sphi 0, %s13
      %p10 = scmp.ge.s32.totalorder %s9, 4
      %s19 = sphi 0, %s21
      %s22 = sphi 0, %s19
      %s23 = sphi 0, %s22
      %s39 = sphi 0, %s23
      %s43 = sphi 0, %s43
      %s45 = sphi 0, %s43
      %s46 = sphi 0, %s45
      %s60 = sphi 0, %s46
      %s64 = sphi 0, %s64
      %s66 = sphi 0, %s64
      %s67 = sphi 0, %s66
      %s81 = sphi 0, %s67
      %s87 = sphi 0, %s89
      %s90 = sphi 0, %s87
      %s91 = sphi 0, %s90
      %s107 = sphi 0, %s91
    $region4: #{model_forward.1} parent=1 // loop_header_branch
      %12 = sbr.rel (%p10) target = $region8
    $region5: #{model_forward.1} parent=1 // loop_body
      %s14 = ssub.s32 %s9, 1
      %s15 = ssub.s32 %s9, 2
      %s16 = sadd.s32 %s9, 1
      %s17 = ssub.s32 %s9, %s16
      %p18 = scmp.eq.s32.totalorder %s17, 0
      %s20 = sadd.s32 %s19, 1
      %s21 = scalar_select %p18, %s19, %s20
      %p24 = pneg %p18
      %p25 = scmp.eq.s32.totalorder %s9, 1
      %p26 = por %p24, %p25
      %p27 = scmp.ne.s32.totalorder %s19, %s22
      %p28 = scmp.eq.s32.totalorder %s9, 0
      %p29 = por %p27, %p28
      %p30 = scmp.ne.s32.totalorder %s19, %s22
      %p31 = scmp.eq.s32.totalorder %s14, 1
      %p32 = por %p30, %p31
      %p33 = scmp.ne.s32.totalorder %s22, %s23
      %p34 = scmp.eq.s32.totalorder %s14, 0
      %p35 = por %p33, %p34
      %p36 = scmp.ne.s32.totalorder %s22, %s23
      %p37 = scmp.eq.s32.totalorder %s15, 1
      %p38 = por %p36, %p37
      %p40 = scmp.ne.s32.totalorder %s23, %s39
      %p41 = scmp.eq.s32.totalorder %s15, 0
      %p42 = por %p40, %p41
      %s44 = sadd.s32 %s43, 1
      %p47 = scmp.eq.s32.totalorder %s9, 1
      %p48 = scmp.ne.s32.totalorder %s43, %s45
      %p49 = scmp.eq.s32.totalorder %s9, 0
      %p50 = por %p48, %p49
      %p51 = scmp.ne.s32.totalorder %s43, %s45
      %p52 = scmp.eq.s32.totalorder %s14, 1
      %p53 = por %p51, %p52
      %p54 = scmp.ne.s32.totalorder %s45, %s46
      %p55 = scmp.eq.s32.totalorder %s14, 0
      %p56 = por %p54, %p55
      %p57 = scmp.ne.s32.totalorder %s45, %s46
      %p58 = scmp.eq.s32.totalorder %s15, 1
      %p59 = por %p57, %p58
      %p61 = scmp.ne.s32.totalorder %s46, %s60
      %p62 = scmp.eq.s32.totalorder %s15, 0
      %p63 = por %p61, %p62
      %s65 = sadd.s32 %s64, 1
      %p68 = scmp.eq.s32.totalorder %s9, 1
      %p69 = scmp.ne.s32.totalorder %s64, %s66
      %p70 = scmp.eq.s32.totalorder %s9, 0
      %p71 = por %p69, %p70
      %p72 = scmp.ne.s32.totalorder %s64, %s66
      %p73 = scmp.eq.s32.totalorder %s14, 1
      %p74 = por %p72, %p73
      %p75 = scmp.ne.s32.totalorder %s66, %s67
      %p76 = scmp.eq.s32.totalorder %s14, 0
      %p77 = por %p75, %p76
      %p78 = scmp.ne.s32.totalorder %s66, %s67
      %p79 = scmp.eq.s32.totalorder %s15, 1
      %p80 = por %p78, %p79
      %p82 = scmp.ne.s32.totalorder %s67, %s81
      %p83 = scmp.eq.s32.totalorder %s15, 0
      %p84 = por %p82, %p83
      %s85 = ssub.s32 %s9, %s16
      %p86 = scmp.eq.s32.totalorder %s85, 0
      %s88 = sadd.s32 %s87, 1
      %s89 = scalar_select %p86, %s87, %s88
      %p92 = pneg %p86
      %p93 = scmp.eq.s32.totalorder %s9, 1
      %p94 = por %p92, %p93
      %p95 = scmp.ne.s32.totalorder %s87, %s90
      %p96 = scmp.eq.s32.totalorder %s9, 0
      %p97 = por %p95, %p96
      %p98 = scmp.ne.s32.totalorder %s87, %s90
      %p99 = scmp.eq.s32.totalorder %s14, 1
      %p100 = por %p98, %p99
      %p101 = scmp.ne.s32.totalorder %s90, %s91
      %p102 = scmp.eq.s32.totalorder %s14, 0
      %p103 = por %p101, %p102
      %p104 = scmp.ne.s32.totalorder %s90, %s91
      %p105 = scmp.eq.s32.totalorder %s15, 1
      %p106 = por %p104, %p105
      %p108 = scmp.ne.s32.totalorder %s91, %s107
      %p109 = scmp.eq.s32.totalorder %s15, 0
      %p110 = por %p108, %p109
      %p111 = scmp.le.s32.totalorder 1, %s9
      %p112 = scmp.lt.s32.totalorder %s9, 3
      %p113 = pnand %p111, %p112
      %p114 = pneg %p113
      // Predicated region
      $region9: #{model_forward.1} parent=5 // pred_check
        _
      $region10: #{model_forward.1} parent=5 // pred_check_branch
        %116 = sbr.rel (%p113) target = $region12
      $region11: #{model_forward.1} parent=5 // pred_region
        %s117 = ssub.s32 %s9, 1
        // Predicated region
        $region13: #{model_forward.1} parent=11 // pred_check
          %p118 = pneg %p56
        $region14: #{model_forward.1} parent=11 // pred_check_branch
          %120 = sbr.rel (%p118) target = $region16
        $region15: #{model_forward.1} parent=11 // pred_region
          _
        $region16: #{model_forward.1} parent=11 // pred_fallthru
          _
        // Predicated region
        $region17: #{model_forward.1} parent=11 // pred_check
          %p121 = pneg %p77
        $region18: #{model_forward.1} parent=11 // pred_check_branch
          %123 = sbr.rel (%p121) target = $region20
        $region19: #{model_forward.1} parent=11 // pred_region
          _
        $region20: #{model_forward.1} parent=11 // pred_fallthru
          _
      $region12: #{model_forward.1} parent=5 // pred_fallthru
        _
      %p124 = scmp.lt.s32.totalorder %s9, 2
      // Predicated region
      $region21: #{model_forward.1} parent=5 // pred_check
        %p125 = pneg %p124
      $region22: #{model_forward.1} parent=5 // pred_check_branch
        %127 = sbr.rel (%p125) target = $region24
      $region23: #{model_forward.1} parent=5 // pred_region
        // Predicated region
        $region25: #{model_forward.1} parent=23 // pred_check
          %p128 = pneg %p29
        $region26: #{model_forward.1} parent=23 // pred_check_branch
          %130 = sbr.rel (%p128) target = $region28
        $region27: #{model_forward.1} parent=23 // pred_region
          %s131 = smul.u32 18, %s9
          %s132 = ssub.s32 35, %s131
          %p133 = scmp.lt.s32.totalorder %s132, 18
          %s134 = scalar_select %p133, %s132, 18
          %s135 = smul.u32 64, %s134
          %p136 = scmp.lt.s32.totalorder %s131, 34
          %s137 = scalar_select %p136, %s131, 34
          %s138 = smul.addr %s137, 4
          %s139 = scalar_lea.vmem %s0, %s138
          %s140 = smul.u32 18, %s9
          %s141 = ssub.s32 35, %s140
          %p142 = scmp.lt.s32.totalorder %s141, 18
          %s143 = scalar_select %p142, %s141, 18
          %s144 = smul.u32 64, %s143
        $region28: #{model_forward.1} parent=23 // pred_fallthru
          _
      $region24: #{model_forward.1} parent=5 // pred_fallthru
        _
      %p145 = scmp.le.s32.totalorder 1, %s9
      %p146 = scmp.lt.s32.totalorder %s9, 3
      %p147 = pnand %p145, %p146
      %p148 = pneg %p147
      // Predicated region
      $region29: #{model_forward.1} parent=5 // pred_check
        _
      $region30: #{model_forward.1} parent=5 // pred_check_branch
        %150 = sbr.rel (%p147) target = $region32
      $region31: #{model_forward.1} parent=5 // pred_region
        %s151 = ssub.s32 %s9, 1
        %s152 = smul.u32 18, %s14
        %s153 = ssub.s32 35, %s152
        %p154 = scmp.lt.s32.totalorder %s153, 18
        %s155 = scalar_select %p154, %s153, 18
        %s156 = smul.u32 64, %s155
        %p157 = scmp.lt.s32.totalorder %s152, 34
        %s158 = scalar_select %p157, %s152, 34
        %s159 = smul.addr %s158, 4
        %s160 = scalar_lea.vmem %s0, %s159
        %p161 = pneg %p35
        %p162 = pneg %p32
        %p163 = pneg %p56
        %p164 = pneg %p53
        %p165 = pneg %p77
        %p166 = pneg %p74
        %p167 = pneg %p103
        %p168 = pneg %p100
        %s169 = sand.u32 %s90, 1
        %s170 = sand.u32 %s90, 1
        %s171 = smul.addr %s170, 144
        %s172 = scalar_lea.vmem [#allocation2], %s171
        %s173 = smul.u32 18, %s14
        %s174 = ssub.s32 35, %s173
        %p175 = scmp.lt.s32.totalorder %s174, 18
        %s176 = scalar_select %p175, %s174, 18
        %s177 = smul.u32 64, %s176
        %p178 = scmp.lt.s32.totalorder %s173, 34
        %s179 = scalar_select %p178, %s173, 34
        %s180 = smul.addr %s179, 4
        %s181 = scalar_lea.vmem %s0, %s180
        %s182 = smul.u32 18, %s14
        %s183 = ssub.s32 35, %s182
        %p184 = scmp.lt.s32.totalorder %s183, 18
        %s185 = scalar_select %p184, %s183, 18
        %s186 = smul.u32 64, %s185
        %s187 = smul.u32 18, %s14
        %s188 = ssub.s32 35, %s187
        %p189 = scmp.lt.s32.totalorder %s188, 18
        %s190 = scalar_select %p189, %s188, 18
        %s191 = smul.u32 128, %s190
        %v192 = vld [vmem:[%s181] sm:$0x77]
        %v193 = vld [vmem:[%s181 + $0x8] sm:$0x77]
        %v194 = vld [vmem:[%s181 + $0x10] sm:$0x77]
        %v195 = vld [vmem:[%s181 + $0x18] sm:$0x77]
        %v196 = vld [vmem:[%s181 + $0x20] sm:$0x77]
        %v197 = vld [vmem:[%s181 + $0x28] sm:$0x77]
        %v198 = vld [vmem:[%s181 + $0x30] sm:$0x77]
        %v199 = vld [vmem:[%s181 + $0x38] sm:$0x77]
        %v200 = vld [vmem:[%s181 + $0x40] sm:$0x77]
        %v201 = vld [vmem:[%s1] sm:$0xff]
        %203 = vset.pattern.permute.xlu0 0
        %204 = vperm.xlu0 %203, %v201
        %v205 = vpop.permute.xlu0 %204
        %v216 = vlaneseq
        %v217 = vshrl.u32 %v216, 7
        %v218 = vsub.s32 0, %v217
        %v219 = vrot.slane %v192, %v218
        %v220 = vlaneseq
        %v221 = vshrl.u32 %v220, 7
        %v222 = vsub.s32 4, %v221
        %v223 = vrot.slane %v192, %v222
        %v224 = vlaneseq
        %v225 = vshrl.u32 %v224, 7
        %v226 = vsub.s32 0, %v225
        %v227 = vrot.slane %v193, %v226
        %v228 = vlaneseq
        %v229 = vshrl.u32 %v228, 7
        %v230 = vsub.s32 4, %v229
        %v231 = vrot.slane %v193, %v230
        %v232 = vlaneseq
        %v233 = vshrl.u32 %v232, 7
        %v234 = vsub.s32 0, %v233
        %v235 = vrot.slane %v194, %v234
        %v236 = vlaneseq
        %v237 = vshrl.u32 %v236, 7
        %v238 = vsub.s32 4, %v237
        %v239 = vrot.slane %v194, %v238
        %v240 = vlaneseq
        %v241 = vshrl.u32 %v240, 7
        %v242 = vsub.s32 0, %v241
        %v243 = vrot.slane %v195, %v242
        %v244 = vlaneseq
        %v245 = vshrl.u32 %v244, 7
        %v246 = vsub.s32 4, %v245
        %v247 = vrot.slane %v195, %v246
        %v248 = vlaneseq
        %v249 = vshrl.u32 %v248, 7
        %v250 = vsub.s32 0, %v249
        %v251 = vrot.slane %v196, %v250
        %v252 = vlaneseq
        %v253 = vshrl.u32 %v252, 7
        %v254 = vsub.s32 4, %v253
        %v255 = vrot.slane %v196, %v254
        %v256 = vlaneseq
        %v257 = vshrl.u32 %v256, 7
        %v258 = vsub.s32 0, %v257
        %v259 = vrot.slane %v197, %v258
        %v260 = vlaneseq
        %v261 = vshrl.u32 %v260, 7
        %v262 = vsub.s32 4, %v261
        %v263 = vrot.slane %v197, %v262
        %v264 = vlaneseq
        %v265 = vshrl.u32 %v264, 7
        %v266 = vsub.s32 0, %v265
        %v267 = vrot.slane %v198, %v266
        %v268 = vlaneseq
        %v269 = vshrl.u32 %v268, 7
        %v270 = vsub.s32 4, %v269
        %v271 = vrot.slane %v198, %v270
        %v272 = vlaneseq
        %v273 = vshrl.u32 %v272, 7
        %v274 = vsub.s32 0, %v273
        %v275 = vrot.slane %v199, %v274
        %v276 = vlaneseq
        %v277 = vshrl.u32 %v276, 7
        %v278 = vsub.s32 4, %v277
        %v279 = vrot.slane %v199, %v278
        %v280 = vlaneseq
        %v281 = vshrl.u32 %v280, 7
        %v282 = vsub.s32 0, %v281
        %v283 = vrot.slane %v200, %v282
        %v284 = vlaneseq
        %v285 = vshrl.u32 %v284, 7
        %v286 = vsub.s32 4, %v285
        %v287 = vrot.slane %v200, %v286
        %v306 = vlaneseq
        %v307 = vshrl.u32 %v306, 7
        %v308 = vsub.s32 0, %v307
        %v309 = vrot.slane %v219, %v308
        %v310 = vlaneseq
        %v311 = vshrl.u32 %v310, 7
        %v312 = vsub.s32 0, %v311
        %v313 = vrot.slane %v223, %v312
        %v314 = vlaneseq
        %v315 = vshrl.u32 %v314, 7
        %v316 = vsub.s32 0, %v315
        %v317 = vrot.slane %v227, %v316
        %v318 = vlaneseq
        %v319 = vshrl.u32 %v318, 7
        %v320 = vsub.s32 0, %v319
        %v321 = vrot.slane %v231, %v320
        %v322 = vlaneseq
        %v323 = vshrl.u32 %v322, 7
        %v324 = vsub.s32 0, %v323
        %v325 = vrot.slane %v235, %v324
        %v326 = vlaneseq
        %v327 = vshrl.u32 %v326, 7
        %v328 = vsub.s32 0, %v327
        %v329 = vrot.slane %v239, %v328
        %v330 = vlaneseq
        %v331 = vshrl.u32 %v330, 7
        %v332 = vsub.s32 0, %v331
        %v333 = vrot.slane %v243, %v332
        %v334 = vlaneseq
        %v335 = vshrl.u32 %v334, 7
        %v336 = vsub.s32 0, %v335
        %v337 = vrot.slane %v247, %v336
        %v338 = vlaneseq
        %v339 = vshrl.u32 %v338, 7
        %v340 = vsub.s32 0, %v339
        %v341 = vrot.slane %v251, %v340
        %v342 = vlaneseq
        %v343 = vshrl.u32 %v342, 7
        %v344 = vsub.s32 0, %v343
        %v345 = vrot.slane %v255, %v344
        %v346 = vlaneseq
        %v347 = vshrl.u32 %v346, 7
        %v348 = vsub.s32 0, %v347
        %v349 = vrot.slane %v259, %v348
        %v350 = vlaneseq
        %v351 = vshrl.u32 %v350, 7
        %v352 = vsub.s32 0, %v351
        %v353 = vrot.slane %v263, %v352
        %v354 = vlaneseq
        %v355 = vshrl.u32 %v354, 7
        %v356 = vsub.s32 0, %v355
        %v357 = vrot.slane %v267, %v356
        %v358 = vlaneseq
        %v359 = vshrl.u32 %v358, 7
        %v360 = vsub.s32 0, %v359
        %v361 = vrot.slane %v271, %v360
        %v362 = vlaneseq
        %v363 = vshrl.u32 %v362, 7
        %v364 = vsub.s32 0, %v363
        %v365 = vrot.slane %v275, %v364
        %v366 = vlaneseq
        %v367 = vshrl.u32 %v366, 7
        %v368 = vsub.s32 0, %v367
        %v369 = vrot.slane %v279, %v368
        %v370 = vlaneseq
        %v371 = vshrl.u32 %v370, 7
        %v372 = vsub.s32 0, %v371
        %v373 = vrot.slane %v283, %v372
        %v374 = vlaneseq
        %v375 = vshrl.u32 %v374, 7
        %v376 = vsub.s32 0, %v375
        %v377 = vrot.slane %v287, %v376
        %v378 = vmul.f32 %v205, %v309
        %v379 = vmul.f32 %v205, %v313
        %v380 = vmul.f32 %v205, %v317
        %v381 = vmul.f32 %v205, %v321
        %v382 = vmul.f32 %v205, %v325
        %v383 = vmul.f32 %v205, %v329
        %v384 = vmul.f32 %v205, %v333
        %v385 = vmul.f32 %v205, %v337
        %v386 = vmul.f32 %v205, %v341
        %v387 = vmul.f32 %v205, %v345
        %v388 = vmul.f32 %v205, %v349
        %v389 = vmul.f32 %v205, %v353
        %v390 = vmul.f32 %v205, %v357
        %v391 = vmul.f32 %v205, %v361
        %v392 = vmul.f32 %v205, %v365
        %v393 = vmul.f32 %v205, %v369
        %v394 = vmul.f32 %v205, %v373
        %v395 = vmul.f32 %v205, %v377
        %396 = vset.pattern.permute.xlu0 1
        %397 = vperm.xlu0 %396, %v201
        %v398 = vpop.permute.xlu0 %397
        %v400 = vlaneseq
        %v401 = vshrl.u32 %v400, 7
        %v402 = vsub.s32 1, %v401
        %v403 = vrot.slane %v192, %v402
        %v404 = vlaneseq
        %v405 = vshrl.u32 %v404, 7
        %v406 = vsub.s32 5, %v405
        %v407 = vrot.slane %v192, %v406
        %v408 = vlaneseq
        %v409 = vshrl.u32 %v408, 7
        %v410 = vsub.s32 1, %v409
        %v411 = vrot.slane %v193, %v410
        %v412 = vlaneseq
        %v413 = vshrl.u32 %v412, 7
        %v414 = vsub.s32 5, %v413
        %v415 = vrot.slane %v193, %v414
        %v416 = vlaneseq
        %v417 = vshrl.u32 %v416, 7
        %v418 = vsub.s32 1, %v417
        %v419 = vrot.slane %v194, %v418
        %v420 = vlaneseq
        %v421 = vshrl.u32 %v420, 7
        %v422 = vsub.s32 5, %v421
        %v423 = vrot.slane %v194, %v422
        %v424 = vlaneseq
        %v425 = vshrl.u32 %v424, 7
        %v426 = vsub.s32 1, %v425
        %v427 = vrot.slane %v195, %v426
        %v428 = vlaneseq
        %v429 = vshrl.u32 %v428, 7
        %v430 = vsub.s32 5, %v429
        %v431 = vrot.slane %v195, %v430
        %v432 = vlaneseq
        %v433 = vshrl.u32 %v432, 7
        %v434 = vsub.s32 1, %v433
        %v435 = vrot.slane %v196, %v434
        %v436 = vlaneseq
        %v437 = vshrl.u32 %v436, 7
        %v438 = vsub.s32 5, %v437
        %v439 = vrot.slane %v196, %v438
        %v440 = vlaneseq
        %v441 = vshrl.u32 %v440, 7
        %v442 = vsub.s32 1, %v441
        %v443 = vrot.slane %v197, %v442
        %v444 = vlaneseq
        %v445 = vshrl.u32 %v444, 7
        %v446 = vsub.s32 5, %v445
        %v447 = vrot.slane %v197, %v446
        %v448 = vlaneseq
        %v449 = vshrl.u32 %v448, 7
        %v450 = vsub.s32 1, %v449
        %v451 = vrot.slane %v198, %v450
        %v452 = vlaneseq
        %v453 = vshrl.u32 %v452, 7
        %v454 = vsub.s32 5, %v453
        %v455 = vrot.slane %v198, %v454
        %v456 = vlaneseq
        %v457 = vshrl.u32 %v456, 7
        %v458 = vsub.s32 1, %v457
        %v459 = vrot.slane %v199, %v458
        %v460 = vlaneseq
        %v461 = vshrl.u32 %v460, 7
        %v462 = vsub.s32 5, %v461
        %v463 = vrot.slane %v199, %v462
        %v464 = vlaneseq
        %v465 = vshrl.u32 %v464, 7
        %v466 = vsub.s32 1, %v465
        %v467 = vrot.slane %v200, %v466
        %v468 = vlaneseq
        %v469 = vshrl.u32 %v468, 7
        %v470 = vsub.s32 5, %v469
        %v471 = vrot.slane %v200, %v470
        %v490 = vlaneseq
        %v491 = vshrl.u32 %v490, 7
        %v492 = vsub.s32 1, %v491
        %v493 = vrot.slane %v403, %v492
        %v494 = vlaneseq
        %v495 = vshrl.u32 %v494, 7
        %v496 = vsub.s32 1, %v495
        %v497 = vrot.slane %v407, %v496
        %v498 = vlaneseq
        %v499 = vshrl.u32 %v498, 7
        %v500 = vsub.s32 1, %v499
        %v501 = vrot.slane %v411, %v500
        %v502 = vlaneseq
        %v503 = vshrl.u32 %v502, 7
        %v504 = vsub.s32 1, %v503
        %v505 = vrot.slane %v415, %v504
        %v506 = vlaneseq
        %v507 = vshrl.u32 %v506, 7
        %v508 = vsub.s32 1, %v507
        %v509 = vrot.slane %v419, %v508
        %v510 = vlaneseq
        %v511 = vshrl.u32 %v510, 7
        %v512 = vsub.s32 1, %v511
        %v513 = vrot.slane %v423, %v512
        %v514 = vlaneseq
        %v515 = vshrl.u32 %v514, 7
        %v516 = vsub.s32 1, %v515
        %v517 = vrot.slane %v427, %v516
        %v518 = vlaneseq
        %v519 = vshrl.u32 %v518, 7
        %v520 = vsub.s32 1, %v519
        %v521 = vrot.slane %v431, %v520
        %v522 = vlaneseq
        %v523 = vshrl.u32 %v522, 7
        %v524 = vsub.s32 1, %v523
        %v525 = vrot.slane %v435, %v524
        %v526 = vlaneseq
        %v527 = vshrl.u32 %v526, 7
        %v528 = vsub.s32 1, %v527
        %v529 = vrot.slane %v439, %v528
        %v530 = vlaneseq
        %v531 = vshrl.u32 %v530, 7
        %v532 = vsub.s32 1, %v531
        %v533 = vrot.slane %v443, %v532
        %v534 = vlaneseq
        %v535 = vshrl.u32 %v534, 7
        %v536 = vsub.s32 1, %v535
        %v537 = vrot.slane %v447, %v536
        %v538 = vlaneseq
        %v539 = vshrl.u32 %v538, 7
        %v540 = vsub.s32 1, %v539
        %v541 = vrot.slane %v451, %v540
        %v542 = vlaneseq
        %v543 = vshrl.u32 %v542, 7
        %v544 = vsub.s32 1, %v543
        %v545 = vrot.slane %v455, %v544
        %v546 = vlaneseq
        %v547 = vshrl.u32 %v546, 7
        %v548 = vsub.s32 1, %v547
        %v549 = vrot.slane %v459, %v548
        %v550 = vlaneseq
        %v551 = vshrl.u32 %v550, 7
        %v552 = vsub.s32 1, %v551
        %v553 = vrot.slane %v463, %v552
        %v554 = vlaneseq
        %v555 = vshrl.u32 %v554, 7
        %v556 = vsub.s32 1, %v555
        %v557 = vrot.slane %v467, %v556
        %v558 = vlaneseq
        %v559 = vshrl.u32 %v558, 7
        %v560 = vsub.s32 1, %v559
        %v561 = vrot.slane %v471, %v560
        %v562 = vmul.f32 %v398, %v493
        %v563 = vmul.f32 %v398, %v497
        %v564 = vmul.f32 %v398, %v501
        %v565 = vmul.f32 %v398, %v505
        %v566 = vmul.f32 %v398, %v509
        %v567 = vmul.f32 %v398, %v513
        %v568 = vmul.f32 %v398, %v517
        %v569 = vmul.f32 %v398, %v521
        %v570 = vmul.f32 %v398, %v525
        %v571 = vmul.f32 %v398, %v529
        %v572 = vmul.f32 %v398, %v533
        %v573 = vmul.f32 %v398, %v537
        %v574 = vmul.f32 %v398, %v541
        %v575 = vmul.f32 %v398, %v545
        %v576 = vmul.f32 %v398, %v549
        %v577 = vmul.f32 %v398, %v553
        %v578 = vmul.f32 %v398, %v557
        %v579 = vmul.f32 %v398, %v561
        %v580 = vadd.f32 %v378, %v562
        %v581 = vadd.f32 %v379, %v563
        %v582 = vadd.f32 %v380, %v564
        %v583 = vadd.f32 %v381, %v565
        %v584 = vadd.f32 %v382, %v566
        %v585 = vadd.f32 %v383, %v567
        %v586 = vadd.f32 %v384, %v568
        %v587 = vadd.f32 %v385, %v569
        %v588 = vadd.f32 %v386, %v570
        %v589 = vadd.f32 %v387, %v571
        %v590 = vadd.f32 %v388, %v572
        %v591 = vadd.f32 %v389, %v573
        %v592 = vadd.f32 %v390, %v574
        %v593 = vadd.f32 %v391, %v575
        %v594 = vadd.f32 %v392, %v576
        %v595 = vadd.f32 %v393, %v577
        %v596 = vadd.f32 %v394, %v578
        %v597 = vadd.f32 %v395, %v579
        %598 = vset.pattern.permute.xlu0 2
        %599 = vperm.xlu0 %598, %v201
        %v600 = vpop.permute.xlu0 %599
        %v602 = vlaneseq
        %v603 = vshrl.u32 %v602, 7
        %v604 = vsub.s32 2, %v603
        %v605 = vrot.slane %v192, %v604
        %v606 = vlaneseq
        %v607 = vshrl.u32 %v606, 7
        %v608 = vsub.s32 6, %v607
        %v609 = vrot.slane %v192, %v608
        %v610 = vlaneseq
        %v611 = vshrl.u32 %v610, 7
        %v612 = vsub.s32 2, %v611
        %v613 = vrot.slane %v193, %v612
        %v614 = vlaneseq
        %v615 = vshrl.u32 %v614, 7
        %v616 = vsub.s32 6, %v615
        %v617 = vrot.slane %v193, %v616
        %v618 = vlaneseq
        %v619 = vshrl.u32 %v618, 7
        %v620 = vsub.s32 2, %v619
        %v621 = vrot.slane %v194, %v620
        %v622 = vlaneseq
        %v623 = vshrl.u32 %v622, 7
        %v624 = vsub.s32 6, %v623
        %v625 = vrot.slane %v194, %v624
        %v626 = vlaneseq
        %v627 = vshrl.u32 %v626, 7
        %v628 = vsub.s32 2, %v627
        %v629 = vrot.slane %v195, %v628
        %v630 = vlaneseq
        %v631 = vshrl.u32 %v630, 7
        %v632 = vsub.s32 6, %v631
        %v633 = vrot.slane %v195, %v632
        %v634 = vlaneseq
        %v635 = vshrl.u32 %v634, 7
        %v636 = vsub.s32 2, %v635
        %v637 = vrot.slane %v196, %v636
        %v638 = vlaneseq
        %v639 = vshrl.u32 %v638, 7
        %v640 = vsub.s32 6, %v639
        %v641 = vrot.slane %v196, %v640
        %v642 = vlaneseq
        %v643 = vshrl.u32 %v642, 7
        %v644 = vsub.s32 2, %v643
        %v645 = vrot.slane %v197, %v644
        %v646 = vlaneseq
        %v647 = vshrl.u32 %v646, 7
        %v648 = vsub.s32 6, %v647
        %v649 = vrot.slane %v197, %v648
        %v650 = vlaneseq
        %v651 = vshrl.u32 %v650, 7
        %v652 = vsub.s32 2, %v651
        %v653 = vrot.slane %v198, %v652
        %v654 = vlaneseq
        %v655 = vshrl.u32 %v654, 7
        %v656 = vsub.s32 6, %v655
        %v657 = vrot.slane %v198, %v656
        %v658 = vlaneseq
        %v659 = vshrl.u32 %v658, 7
        %v660 = vsub.s32 2, %v659
        %v661 = vrot.slane %v199, %v660
        %v662 = vlaneseq
        %v663 = vshrl.u32 %v662, 7
        %v664 = vsub.s32 6, %v663
        %v665 = vrot.slane %v199, %v664
        %v666 = vlaneseq
        %v667 = vshrl.u32 %v666, 7
        %v668 = vsub.s32 2, %v667
        %v669 = vrot.slane %v200, %v668
        %v670 = vlaneseq
        %v671 = vshrl.u32 %v670, 7
        %v672 = vsub.s32 6, %v671
        %v673 = vrot.slane %v200, %v672
        %v692 = vlaneseq
        %v693 = vshrl.u32 %v692, 7
        %v694 = vsub.s32 2, %v693
        %v695 = vrot.slane %v605, %v694
        %v696 = vlaneseq
        %v697 = vshrl.u32 %v696, 7
        %v698 = vsub.s32 2, %v697
        %v699 = vrot.slane %v609, %v698
        %v700 = vlaneseq
        %v701 = vshrl.u32 %v700, 7
        %v702 = vsub.s32 2, %v701
        %v703 = vrot.slane %v613, %v702
        %v704 = vlaneseq
        %v705 = vshrl.u32 %v704, 7
        %v706 = vsub.s32 2, %v705
        %v707 = vrot.slane %v617, %v706
        %v708 = vlaneseq
        %v709 = vshrl.u32 %v708, 7
        %v710 = vsub.s32 2, %v709
        %v711 = vrot.slane %v621, %v710
        %v712 = vlaneseq
        %v713 = vshrl.u32 %v712, 7
        %v714 = vsub.s32 2, %v713
        %v715 = vrot.slane %v625, %v714
        %v716 = vlaneseq
        %v717 = vshrl.u32 %v716, 7
        %v718 = vsub.s32 2, %v717
        %v719 = vrot.slane %v629, %v718
        %v720 = vlaneseq
        %v721 = vshrl.u32 %v720, 7
        %v722 = vsub.s32 2, %v721
        %v723 = vrot.slane %v633, %v722
        %v724 = vlaneseq
        %v725 = vshrl.u32 %v724, 7
        %v726 = vsub.s32 2, %v725
        %v727 = vrot.slane %v637, %v726
        %v728 = vlaneseq
        %v729 = vshrl.u32 %v728, 7
        %v730 = vsub.s32 2, %v729
        %v731 = vrot.slane %v641, %v730
        %v732 = vlaneseq
        %v733 = vshrl.u32 %v732, 7
        %v734 = vsub.s32 2, %v733
        %v735 = vrot.slane %v645, %v734
        %v736 = vlaneseq
        %v737 = vshrl.u32 %v736, 7
        %v738 = vsub.s32 2, %v737
        %v739 = vrot.slane %v649, %v738
        %v740 = vlaneseq
        %v741 = vshrl.u32 %v740, 7
        %v742 = vsub.s32 2, %v741
        %v743 = vrot.slane %v653, %v742
        %v744 = vlaneseq
        %v745 = vshrl.u32 %v744, 7
        %v746 = vsub.s32 2, %v745
        %v747 = vrot.slane %v657, %v746
        %v748 = vlaneseq
        %v749 = vshrl.u32 %v748, 7
        %v750 = vsub.s32 2, %v749
        %v751 = vrot.slane %v661, %v750
        %v752 = vlaneseq
        %v753 = vshrl.u32 %v752, 7
        %v754 = vsub.s32 2, %v753
        %v755 = vrot.slane %v665, %v754
        %v756 = vlaneseq
        %v757 = vshrl.u32 %v756, 7
        %v758 = vsub.s32 2, %v757
        %v759 = vrot.slane %v669, %v758
        %v760 = vlaneseq
        %v761 = vshrl.u32 %v760, 7
        %v762 = vsub.s32 2, %v761
        %v763 = vrot.slane %v673, %v762
        %v764 = vmul.f32 %v600, %v695
        %v765 = vmul.f32 %v600, %v699
        %v766 = vmul.f32 %v600, %v703
        %v767 = vmul.f32 %v600, %v707
        %v768 = vmul.f32 %v600, %v711
        %v769 = vmul.f32 %v600, %v715
        %v770 = vmul.f32 %v600, %v719
        %v771 = vmul.f32 %v600, %v723
        %v772 = vmul.f32 %v600, %v727
        %v773 = vmul.f32 %v600, %v731
        %v774 = vmul.f32 %v600, %v735
        %v775 = vmul.f32 %v600, %v739
        %v776 = vmul.f32 %v600, %v743
        %v777 = vmul.f32 %v600, %v747
        %v778 = vmul.f32 %v600, %v751
        %v779 = vmul.f32 %v600, %v755
        %v780 = vmul.f32 %v600, %v759
        %v781 = vmul.f32 %v600, %v763
        %v782 = vadd.f32 %v580, %v764
        %v783 = vadd.f32 %v581, %v765
        %v784 = vadd.f32 %v582, %v766
        %v785 = vadd.f32 %v583, %v767
        %v786 = vadd.f32 %v584, %v768
        %v787 = vadd.f32 %v585, %v769
        %v788 = vadd.f32 %v586, %v770
        %v789 = vadd.f32 %v587, %v771
        %v790 = vadd.f32 %v588, %v772
        %v791 = vadd.f32 %v589, %v773
        %v792 = vadd.f32 %v590, %v774
        %v793 = vadd.f32 %v591, %v775
        %v794 = vadd.f32 %v592, %v776
        %v795 = vadd.f32 %v593, %v777
        %v796 = vadd.f32 %v594, %v778
        %v797 = vadd.f32 %v595, %v779
        %v798 = vadd.f32 %v596, %v780
        %v799 = vadd.f32 %v597, %v781
        %v800 = vld [vmem:[%s2] sm:$0xff]
        %802 = vset.pattern.permute.xlu0 0
        %803 = vperm.xlu0 %802, %v800
        %v804 = vpop.permute.xlu0 %803
        %v806 = vadd.f32 %v782, %v804
        %v807 = vadd.f32 %v783, %v804
        %v808 = vadd.f32 %v784, %v804
        %v809 = vadd.f32 %v785, %v804
        %v810 = vadd.f32 %v786, %v804
        %v811 = vadd.f32 %v787, %v804
        %v812 = vadd.f32 %v788, %v804
        %v813 = vadd.f32 %v789, %v804
        %v814 = vadd.f32 %v790, %v804
        %v815 = vadd.f32 %v791, %v804
        %v816 = vadd.f32 %v792, %v804
        %v817 = vadd.f32 %v793, %v804
        %v818 = vadd.f32 %v794, %v804
        %v819 = vadd.f32 %v795, %v804
        %v820 = vadd.f32 %v796, %v804
        %v821 = vadd.f32 %v797, %v804
        %v822 = vadd.f32 %v798, %v804
        %v823 = vadd.f32 %v799, %v804
        %824 = vst [vmem:[%s172] sm:$0xff] %v806
        %825 = vst [vmem:[%s172 + $0x8] sm:$0xff] %v807
        %826 = vst [vmem:[%s172 + $0x10] sm:$0xff] %v808
        %827 = vst [vmem:[%s172 + $0x18] sm:$0xff] %v809
        %828 = vst [vmem:[%s172 + $0x20] sm:$0xff] %v810
        %829 = vst [vmem:[%s172 + $0x28] sm:$0xff] %v811
        %830 = vst [vmem:[%s172 + $0x30] sm:$0xff] %v812
        %831 = vst [vmem:[%s172 + $0x38] sm:$0xff] %v813
        %832 = vst [vmem:[%s172 + $0x40] sm:$0xff] %v814
        %833 = vst [vmem:[%s172 + $0x48] sm:$0xff] %v815
        %834 = vst [vmem:[%s172 + $0x50] sm:$0xff] %v816
        %835 = vst [vmem:[%s172 + $0x58] sm:$0xff] %v817
        %836 = vst [vmem:[%s172 + $0x60] sm:$0xff] %v818
        %837 = vst [vmem:[%s172 + $0x68] sm:$0xff] %v819
        %838 = vst [vmem:[%s172 + $0x70] sm:$0xff] %v820
        %839 = vst [vmem:[%s172 + $0x78] sm:$0xff] %v821
        %840 = vst [vmem:[%s172 + $0x80] sm:$0xff] %v822
        %841 = vst [vmem:[%s172 + $0x88] sm:$0xff] %v823
        %s842 = sand.u32 %s90, 1
        %s843 = sand.u32 %s90, 1
        %s844 = smul.addr %s843, 144
        %s845 = scalar_lea.vmem [#allocation2], %s844
        // Predicated region
        $region33: #{model_forward.1} parent=31 // pred_check
          %p846 = pneg %p100
        $region34: #{model_forward.1} parent=31 // pred_check_branch
          %848 = sbr.rel (%p846) target = $region36
        $region35: #{model_forward.1} parent=31 // pred_region
          %s849 = smul.u32 18, %s14
          %s850 = ssub.s32 35, %s849
          %p851 = scmp.lt.s32.totalorder %s850, 18
          %s852 = scalar_select %p851, %s850, 18
          %s853 = smul.u32 128, %s852
          %p854 = scmp.ne.s32.totalorder 0, %s853
          %s855 = smul.addr %s849, 8
          %s856 = scalar_lea.vmem %s3, %s855
          %s857 = smul.u32 %s852, 8
          // Predicated region
          $region37: #{model_forward.1} parent=35 // pred_check
            %p858 = pneg %p854
          $region38: #{model_forward.1} parent=35 // pred_check_branch
            %860 = sbr.rel (%p858) target = $region40
          $region39: #{model_forward.1} parent=35 // pred_region
            %p861 = scmp.lt.u32.totalorder %s857, 8
            %p862 = pneg %p861
            // Predicated region
            $region41: #{model_forward.1} parent=39 // pred_check
              _
            $region42: #{model_forward.1} parent=39 // pred_check_branch
              %864 = sbr.rel (%p861) target = $region44
            $region43: #{model_forward.1} parent=39 // pred_region
              %s880 = sand.u32 %s857, 7
              %p881 = scmp.eq.s32.totalorder %s880, 0
              // Predicated region
              $region56: #{model_forward.1} parent=43 // pred_check
                %p882 = pneg %p881
              $region57: #{model_forward.1} parent=43 // pred_check_branch
                %884 = sbr.rel (%p882) target = $region59
              $region58: #{model_forward.1} parent=43 // pred_region
                %s885 = sshrl.u32 %s857, 3
                %s886 = sshrl.u32 %s885, 6
                // While loop
                $region60: #{model_forward.1} parent=58 // loop_pre_header
                  _
                $region61: #{model_forward.1} parent=58 // loop_header
                  %s890 = sphi 0, %s892
                  %p891 = scmp.ge.s32.totalorder %s890, %s886
                  %s895 = sphi 0, %s1028
                  %s896 = sphi %s845, %s1031
                  %s897 = sphi %s856, %s1032
                $region62: #{model_forward.1} parent=58 // loop_header_branch
                  %894 = sbr.rel (%p891) target = $region66
                $region63: #{model_forward.1} parent=58 // loop_body
                  %v898 = vld [vmem:[%s896] sm:$0xff]
                  %899 = vst [vmem:[%s897] sm:$0xff] %v898
                  %v900 = vld [vmem:[%s896 + $0x8] sm:$0xff]
                  %901 = vst [vmem:[%s897 + $0x8] sm:$0xff] %v900
                  %v902 = vld [vmem:[%s896 + $0x10] sm:$0xff]
                  %903 = vst [vmem:[%s897 + $0x10] sm:$0xff] %v902
                  %v904 = vld [vmem:[%s896 + $0x18] sm:$0xff]
                  %905 = vst [vmem:[%s897 + $0x18] sm:$0xff] %v904
                  %v906 = vld [vmem:[%s896 + $0x20] sm:$0xff]
                  %907 = vst [vmem:[%s897 + $0x20] sm:$0xff] %v906
                  %v908 = vld [vmem:[%s896 + $0x28] sm:$0xff]
                  %909 = vst [vmem:[%s897 + $0x28] sm:$0xff] %v908
                  %v910 = vld [vmem:[%s896 + $0x30] sm:$0xff]
                  %911 = vst [vmem:[%s897 + $0x30] sm:$0xff] %v910
                  %v912 = vld [vmem:[%s896 + $0x38] sm:$0xff]
                  %913 = vst [vmem:[%s897 + $0x38] sm:$0xff] %v912
                  %v914 = vld [vmem:[%s896 + $0x40] sm:$0xff]
                  %915 = vst [vmem:[%s897 + $0x40] sm:$0xff] %v914
                  %v916 = vld [vmem:[%s896 + $0x48] sm:$0xff]
                  %917 = vst [vmem:[%s897 + $0x48] sm:$0xff] %v916
                  %v918 = vld [vmem:[%s896 + $0x50] sm:$0xff]
                  %919 = vst [vmem:[%s897 + $0x50] sm:$0xff] %v918
                  %v920 = vld [vmem:[%s896 + $0x58] sm:$0xff]
                  %921 = vst [vmem:[%s897 + $0x58] sm:$0xff] %v920
                  %v922 = vld [vmem:[%s896 + $0x60] sm:$0xff]
                  %923 = vst [vmem:[%s897 + $0x60] sm:$0xff] %v922
                  %v924 = vld [vmem:[%s896 + $0x68] sm:$0xff]
                  %925 = vst [vmem:[%s897 + $0x68] sm:$0xff] %v924
                  %v926 = vld [vmem:[%s896 + $0x70] sm:$0xff]
                  %927 = vst [vmem:[%s897 + $0x70] sm:$0xff] %v926
                  %v928 = vld [vmem:[%s896 + $0x78] sm:$0xff]
                  %929 = vst [vmem:[%s897 + $0x78] sm:$0xff] %v928
                  %v930 = vld [vmem:[%s896 + $0x80] sm:$0xff]
                  %931 = vst [vmem:[%s897 + $0x80] sm:$0xff] %v930
                  %v932 = vld [vmem:[%s896 + $0x88] sm:$0xff]
                  %933 = vst [vmem:[%s897 + $0x88] sm:$0xff] %v932
                  %v934 = vld [vmem:[%s896 + $0x90] sm:$0xff]
                  %935 = vst [vmem:[%s897 + $0x90] sm:$0xff] %v934
                  %v936 = vld [vmem:[%s896 + $0x98] sm:$0xff]
                  %937 = vst [vmem:[%s897 + $0x98] sm:$0xff] %v936
                  %v938 = vld [vmem:[%s896 + $0xa0] sm:$0xff]
                  %939 = vst [vmem:[%s897 + $0xa0] sm:$0xff] %v938
                  %v940 = vld [vmem:[%s896 + $0xa8] sm:$0xff]
                  %941 = vst [vmem:[%s897 + $0xa8] sm:$0xff] %v940
                  %v942 = vld [vmem:[%s896 + $0xb0] sm:$0xff]
                  %943 = vst [vmem:[%s897 + $0xb0] sm:$0xff] %v942
                  %v944 = vld [vmem:[%s896 + $0xb8] sm:$0xff]
                  %945 = vst [vmem:[%s897 + $0xb8] sm:$0xff] %v944
                  %v946 = vld [vmem:[%s896 + $0xc0] sm:$0xff]
                  %947 = vst [vmem:[%s897 + $0xc0] sm:$0xff] %v946
                  %v948 = vld [vmem:[%s896 + $0xc8] sm:$0xff]
                  %949 = vst [vmem:[%s897 + $0xc8] sm:$0xff] %v948
                  %v950 = vld [vmem:[%s896 + $0xd0] sm:$0xff]
                  %951 = vst [vmem:[%s897 + $0xd0] sm:$0xff] %v950
                  %v952 = vld [vmem:[%s896 + $0xd8] sm:$0xff]
                  %953 = vst [vmem:[%s897 + $0xd8] sm:$0xff] %v952
                  %v954 = vld [vmem:[%s896 + $0xe0] sm:$0xff]
                  %955 = vst [vmem:[%s897 + $0xe0] sm:$0xff] %v954
                  %v956 = vld [vmem:[%s896 + $0xe8] sm:$0xff]
                  %957 = vst [vmem:[%s897 + $0xe8] sm:$0xff] %v956
                  %v958 = vld [vmem:[%s896 + $0xf0] sm:$0xff]
                  %959 = vst [vmem:[%s897 + $0xf0] sm:$0xff] %v958
                  %v960 = vld [vmem:[%s896 + $0xf8] sm:$0xff]
                  %961 = vst [vmem:[%s897 + $0xf8] sm:$0xff] %v960
                  %v962 = vld [vmem:[%s896 + $0x100] sm:$0xff]
                  %963 = vst [vmem:[%s897 + $0x100] sm:$0xff] %v962
                  %v964 = vld [vmem:[%s896 + $0x108] sm:$0xff]
                  %965 = vst [vmem:[%s897 + $0x108] sm:$0xff] %v964
                  %v966 = vld [vmem:[%s896 + $0x110] sm:$0xff]
                  %967 = vst [vmem:[%s897 + $0x110] sm:$0xff] %v966
                  %v968 = vld [vmem:[%s896 + $0x118] sm:$0xff]
                  %969 = vst [vmem:[%s897 + $0x118] sm:$0xff] %v968
                  %v970 = vld [vmem:[%s896 + $0x120] sm:$0xff]
                  %971 = vst [vmem:[%s897 + $0x120] sm:$0xff] %v970
                  %v972 = vld [vmem:[%s896 + $0x128] sm:$0xff]
                  %973 = vst [vmem:[%s897 + $0x128] sm:$0xff] %v972
                  %v974 = vld [vmem:[%s896 + $0x130] sm:$0xff]
                  %975 = vst [vmem:[%s897 + $0x130] sm:$0xff] %v974
                  %v976 = vld [vmem:[%s896 + $0x138] sm:$0xff]
                  %977 = vst [vmem:[%s897 + $0x138] sm:$0xff] %v976
                  %v978 = vld [vmem:[%s896 + $0x140] sm:$0xff]
                  %979 = vst [vmem:[%s897 + $0x140] sm:$0xff] %v978
                  %v980 = vld [vmem:[%s896 + $0x148] sm:$0xff]
                  %981 = vst [vmem:[%s897 + $0x148] sm:$0xff] %v980
                  %v982 = vld [vmem:[%s896 + $0x150] sm:$0xff]
                  %983 = vst [vmem:[%s897 + $0x150] sm:$0xff] %v982
                  %v984 = vld [vmem:[%s896 + $0x158] sm:$0xff]
                  %985 = vst [vmem:[%s897 + $0x158] sm:$0xff] %v984
                  %v986 = vld [vmem:[%s896 + $0x160] sm:$0xff]
                  %987 = vst [vmem:[%s897 + $0x160] sm:$0xff] %v986
                  %v988 = vld [vmem:[%s896 + $0x168] sm:$0xff]
                  %989 = vst [vmem:[%s897 + $0x168] sm:$0xff] %v988
                  %v990 = vld [vmem:[%s896 + $0x170] sm:$0xff]
                  %991 = vst [vmem:[%s897 + $0x170] sm:$0xff] %v990
                  %v992 = vld [vmem:[%s896 + $0x178] sm:$0xff]
                  %993 = vst [vmem:[%s897 + $0x178] sm:$0xff] %v992
                  %v994 = vld [vmem:[%s896 + $0x180] sm:$0xff]
                  %995 = vst [vmem:[%s897 + $0x180] sm:$0xff] %v994
                  %v996 = vld [vmem:[%s896 + $0x188] sm:$0xff]
                  %997 = vst [vmem:[%s897 + $0x188] sm:$0xff] %v996
                  %v998 = vld [vmem:[%s896 + $0x190] sm:$0xff]
                  %999 = vst [vmem:[%s897 + $0x190] sm:$0xff] %v998
                  %v1000 = vld [vmem:[%s896 + $0x198] sm:$0xff]
                  %1001 = vst [vmem:[%s897 + $0x198] sm:$0xff] %v1000
                  %v1002 = vld [vmem:[%s896 + $0x1a0] sm:$0xff]
                  %1003 = vst [vmem:[%s897 + $0x1a0] sm:$0xff] %v1002
                  %v1004 = vld [vmem:[%s896 + $0x1a8] sm:$0xff]
                  %1005 = vst [vmem:[%s897 + $0x1a8] sm:$0xff] %v1004
                  %v1006 = vld [vmem:[%s896 + $0x1b0] sm:$0xff]
                  %1007 = vst [vmem:[%s897 + $0x1b0] sm:$0xff] %v1006
                  %v1008 = vld [vmem:[%s896 + $0x1b8] sm:$0xff]
                  %1009 = vst [vmem:[%s897 + $0x1b8] sm:$0xff] %v1008
                  %v1010 = vld [vmem:[%s896 + $0x1c0] sm:$0xff]
                  %1011 = vst [vmem:[%s897 + $0x1c0] sm:$0xff] %v1010
                  %v1012 = vld [vmem:[%s896 + $0x1c8] sm:$0xff]
                  %1013 = vst [vmem:[%s897 + $0x1c8] sm:$0xff] %v1012
                  %v1014 = vld [vmem:[%s896 + $0x1d0] sm:$0xff]
                  %1015 = vst [vmem:[%s897 + $0x1d0] sm:$0xff] %v1014
                  %v1016 = vld [vmem:[%s896 + $0x1d8] sm:$0xff]
                  %1017 = vst [vmem:[%s897 + $0x1d8] sm:$0xff] %v1016
                  %v1018 = vld [vmem:[%s896 + $0x1e0] sm:$0xff]
                  %1019 = vst [vmem:[%s897 + $0x1e0] sm:$0xff] %v1018
                  %v1020 = vld [vmem:[%s896 + $0x1e8] sm:$0xff]
                  %1021 = vst [vmem:[%s897 + $0x1e8] sm:$0xff] %v1020
                  %v1022 = vld [vmem:[%s896 + $0x1f0] sm:$0xff]
                  %1023 = vst [vmem:[%s897 + $0x1f0] sm:$0xff] %v1022
                  %v1024 = vld [vmem:[%s896 + $0x1f8] sm:$0xff]
                  %1025 = vst [vmem:[%s897 + $0x1f8] sm:$0xff] %v1024
                  %s1026 = sadd.s32 1, %s895
                  %p1027 = scmp.ge.s32.totalorder %s1026, %s886
                  %s1028 = scalar_select %p1027, 0, %s1026
                  %s1029 = smul.u32 %s1028, 512
                  %s1030 = smul.u32 %s1028, 512
                  %s1031 = scalar_lea.vmem %s845, %s1029 [#allocation2]
                  %s1032 = scalar_lea.vmem %s856, %s1030
                $region64: #{model_forward.1} parent=58 // loop_footer
                  %s892 = sadd.s32 %s890, 1
                $region65: #{model_forward.1} parent=58 // loop_footer_branch
                  %889 = sbr.rel target = $region61
                $region66: #{model_forward.1} parent=58 // loop_exit
                  _
                %s1033 = sshrl.u32 %s885, 6
                %s1034 = sand.u32 %s885, 63
                %s1035 = smul.u32 %s1033, 64
                %s1036 = smul.u32 128, %s1035
                %s1037 = sshra.s32 %s1036, 4
                %s1038 = scalar_lea.vmem %s845, %s1037 [#allocation2]
                %s1039 = smul.u32 128, %s1035
                %s1040 = sshra.s32 %s1039, 4
                %s1041 = scalar_lea.vmem %s856, %s1040
                // While loop
                $region67: #{model_forward.1} parent=58 // loop_pre_header
                  _
                $region68: #{model_forward.1} parent=58 // loop_header
                  %s1045 = sphi 0, %s1047
                  %p1046 = scmp.ge.s32.totalorder %s1045, %s1034
                  %s1050 = sphi 0, %s1057
                  %s1051 = sphi %s1038, %s1060
                  %s1052 = sphi %s1041, %s1061
                $region69: #{model_forward.1} parent=58 // loop_header_branch
                  %1049 = sbr.rel (%p1046) target = $region73
                $region70: #{model_forward.1} parent=58 // loop_body
                  %v1053 = vld [vmem:[%s1051] sm:$0xff]
                  %1054 = vst [vmem:[%s1052] sm:$0xff] %v1053
                  %s1055 = sadd.s32 1, %s1050
                  %p1056 = scmp.ge.s32.totalorder %s1055, %s1034
                  %s1057 = scalar_select %p1056, 0, %s1055
                  %s1058 = smul.u32 %s1057, 8
                  %s1059 = smul.u32 %s1057, 8
                  %s1060 = scalar_lea.vmem %s1038, %s1058 [#allocation2]
                  %s1061 = scalar_lea.vmem %s1041, %s1059
                $region71: #{model_forward.1} parent=58 // loop_footer
                  %s1047 = sadd.s32 %s1045, 1
                $region72: #{model_forward.1} parent=58 // loop_footer_branch
                  %1044 = sbr.rel target = $region68
                $region73: #{model_forward.1} parent=58 // loop_exit
                  _
              $region59: #{model_forward.1} parent=43 // pred_fallthru
                _
              %p1062 = pneg %p881
              // Predicated region
              $region74: #{model_forward.1} parent=43 // pred_check
                _
              $region75: #{model_forward.1} parent=43 // pred_check_branch
                %1064 = sbr.rel (%p881) target = $region77
              $region76: #{model_forward.1} parent=43 // pred_region
                %s1065 = sand.u32 %s857, 7
                %s1066 = ssub.s32 %s857, %s1065
                %s1067 = scalar_lea.vmem %s845, %s1066 [#allocation2]
                %s1068 = ssub.s32 %s857, %s1065
                %s1069 = scalar_lea.vmem %s856, %s1068
                %s1070 = sshrl.u32 %s857, 3
                %s1071 = sshrl.u32 %s1070, 6
                // While loop
                $region78: #{model_forward.1} parent=76 // loop_pre_header
                  _
                $region79: #{model_forward.1} parent=76 // loop_header
                  %s1075 = sphi 0, %s1077
                  %p1076 = scmp.ge.s32.totalorder %s1075, %s1071
                  %s1080 = sphi 0, %s1213
                  %s1081 = sphi %s845, %s1216
                  %s1082 = sphi %s856, %s1217
                $region80: #{model_forward.1} parent=76 // loop_header_branch
                  %1079 = sbr.rel (%p1076) target = $region84
                $region81: #{model_forward.1} parent=76 // loop_body
                  %v1083 = vld [vmem:[%s1081] sm:$0xff]
                  %1084 = vst [vmem:[%s1082] sm:$0xff] %v1083
                  %v1085 = vld [vmem:[%s1081 + $0x8] sm:$0xff]
                  %1086 = vst [vmem:[%s1082 + $0x8] sm:$0xff] %v1085
                  %v1087 = vld [vmem:[%s1081 + $0x10] sm:$0xff]
                  %1088 = vst [vmem:[%s1082 + $0x10] sm:$0xff] %v1087
                  %v1089 = vld [vmem:[%s1081 + $0x18] sm:$0xff]
                  %1090 = vst [vmem:[%s1082 + $0x18] sm:$0xff] %v1089
                  %v1091 = vld [vmem:[%s1081 + $0x20] sm:$0xff]
                  %1092 = vst [vmem:[%s1082 + $0x20] sm:$0xff] %v1091
                  %v1093 = vld [vmem:[%s1081 + $0x28] sm:$0xff]
                  %1094 = vst [vmem:[%s1082 + $0x28] sm:$0xff] %v1093
                  %v1095 = vld [vmem:[%s1081 + $0x30] sm:$0xff]
                  %1096 = vst [vmem:[%s1082 + $0x30] sm:$0xff] %v1095
                  %v1097 = vld [vmem:[%s1081 + $0x38] sm:$0xff]
                  %1098 = vst [vmem:[%s1082 + $0x38] sm:$0xff] %v1097
                  %v1099 = vld [vmem:[%s1081 + $0x40] sm:$0xff]
                  %1100 = vst [vmem:[%s1082 + $0x40] sm:$0xff] %v1099
                  %v1101 = vld [vmem:[%s1081 + $0x48] sm:$0xff]
                  %1102 = vst [vmem:[%s1082 + $0x48] sm:$0xff] %v1101
                  %v1103 = vld [vmem:[%s1081 + $0x50] sm:$0xff]
                  %1104 = vst [vmem:[%s1082 + $0x50] sm:$0xff] %v1103
                  %v1105 = vld [vmem:[%s1081 + $0x58] sm:$0xff]
                  %1106 = vst [vmem:[%s1082 + $0x58] sm:$0xff] %v1105
                  %v1107 = vld [vmem:[%s1081 + $0x60] sm:$0xff]
                  %1108 = vst [vmem:[%s1082 + $0x60] sm:$0xff] %v1107
                  %v1109 = vld [vmem:[%s1081 + $0x68] sm:$0xff]
                  %1110 = vst [vmem:[%s1082 + $0x68] sm:$0xff] %v1109
                  %v1111 = vld [vmem:[%s1081 + $0x70] sm:$0xff]
                  %1112 = vst [vmem:[%s1082 + $0x70] sm:$0xff] %v1111
                  %v1113 = vld [vmem:[%s1081 + $0x78] sm:$0xff]
                  %1114 = vst [vmem:[%s1082 + $0x78] sm:$0xff] %v1113
                  %v1115 = vld [vmem:[%s1081 + $0x80] sm:$0xff]
                  %1116 = vst [vmem:[%s1082 + $0x80] sm:$0xff] %v1115
                  %v1117 = vld [vmem:[%s1081 + $0x88] sm:$0xff]
                  %1118 = vst [vmem:[%s1082 + $0x88] sm:$0xff] %v1117
                  %v1119 = vld [vmem:[%s1081 + $0x90] sm:$0xff]
                  %1120 = vst [vmem:[%s1082 + $0x90] sm:$0xff] %v1119
                  %v1121 = vld [vmem:[%s1081 + $0x98] sm:$0xff]
                  %1122 = vst [vmem:[%s1082 + $0x98] sm:$0xff] %v1121
                  %v1123 = vld [vmem:[%s1081 + $0xa0] sm:$0xff]
                  %1124 = vst [vmem:[%s1082 + $0xa0] sm:$0xff] %v1123
                  %v1125 = vld [vmem:[%s1081 + $0xa8] sm:$0xff]
                  %1126 = vst [vmem:[%s1082 + $0xa8] sm:$0xff] %v1125
                  %v1127 = vld [vmem:[%s1081 + $0xb0] sm:$0xff]
                  %1128 = vst [vmem:[%s1082 + $0xb0] sm:$0xff] %v1127
                  %v1129 = vld [vmem:[%s1081 + $0xb8] sm:$0xff]
                  %1130 = vst [vmem:[%s1082 + $0xb8] sm:$0xff] %v1129
                  %v1131 = vld [vmem:[%s1081 + $0xc0] sm:$0xff]
                  %1132 = vst [vmem:[%s1082 + $0xc0] sm:$0xff] %v1131
                  %v1133 = vld [vmem:[%s1081 + $0xc8] sm:$0xff]
                  %1134 = vst [vmem:[%s1082 + $0xc8] sm:$0xff] %v1133
                  %v1135 = vld [vmem:[%s1081 + $0xd0] sm:$0xff]
                  %1136 = vst [vmem:[%s1082 + $0xd0] sm:$0xff] %v1135
                  %v1137 = vld [vmem:[%s1081 + $0xd8] sm:$0xff]
                  %1138 = vst [vmem:[%s1082 + $0xd8] sm:$0xff] %v1137
                  %v1139 = vld [vmem:[%s1081 + $0xe0] sm:$0xff]
                  %1140 = vst [vmem:[%s1082 + $0xe0] sm:$0xff] %v1139
                  %v1141 = vld [vmem:[%s1081 + $0xe8] sm:$0xff]
                  %1142 = vst [vmem:[%s1082 + $0xe8] sm:$0xff] %v1141
                  %v1143 = vld [vmem:[%s1081 + $0xf0] sm:$0xff]
                  %1144 = vst [vmem:[%s1082 + $0xf0] sm:$0xff] %v1143
                  %v1145 = vld [vmem:[%s1081 + $0xf8] sm:$0xff]
                  %1146 = vst [vmem:[%s1082 + $0xf8] sm:$0xff] %v1145
                  %v1147 = vld [vmem:[%s1081 + $0x100] sm:$0xff]
                  %1148 = vst [vmem:[%s1082 + $0x100] sm:$0xff] %v1147
                  %v1149 = vld [vmem:[%s1081 + $0x108] sm:$0xff]
                  %1150 = vst [vmem:[%s1082 + $0x108] sm:$0xff] %v1149
                  %v1151 = vld [vmem:[%s1081 + $0x110] sm:$0xff]
                  %1152 = vst [vmem:[%s1082 + $0x110] sm:$0xff] %v1151
                  %v1153 = vld [vmem:[%s1081 + $0x118] sm:$0xff]
                  %1154 = vst [vmem:[%s1082 + $0x118] sm:$0xff] %v1153
                  %v1155 = vld [vmem:[%s1081 + $0x120] sm:$0xff]
                  %1156 = vst [vmem:[%s1082 + $0x120] sm:$0xff] %v1155
                  %v1157 = vld [vmem:[%s1081 + $0x128] sm:$0xff]
                  %1158 = vst [vmem:[%s1082 + $0x128] sm:$0xff] %v1157
                  %v1159 = vld [vmem:[%s1081 + $0x130] sm:$0xff]
                  %1160 = vst [vmem:[%s1082 + $0x130] sm:$0xff] %v1159
                  %v1161 = vld [vmem:[%s1081 + $0x138] sm:$0xff]
                  %1162 = vst [vmem:[%s1082 + $0x138] sm:$0xff] %v1161
                  %v1163 = vld [vmem:[%s1081 + $0x140] sm:$0xff]
                  %1164 = vst [vmem:[%s1082 + $0x140] sm:$0xff] %v1163
                  %v1165 = vld [vmem:[%s1081 + $0x148] sm:$0xff]
                  %1166 = vst [vmem:[%s1082 + $0x148] sm:$0xff] %v1165
                  %v1167 = vld [vmem:[%s1081 + $0x150] sm:$0xff]
                  %1168 = vst [vmem:[%s1082 + $0x150] sm:$0xff] %v1167
                  %v1169 = vld [vmem:[%s1081 + $0x158] sm:$0xff]
                  %1170 = vst [vmem:[%s1082 + $0x158] sm:$0xff] %v1169
                  %v1171 = vld [vmem:[%s1081 + $0x160] sm:$0xff]
                  %1172 = vst [vmem:[%s1082 + $0x160] sm:$0xff] %v1171
                  %v1173 = vld [vmem:[%s1081 + $0x168] sm:$0xff]
                  %1174 = vst [vmem:[%s1082 + $0x168] sm:$0xff] %v1173
                  %v1175 = vld [vmem:[%s1081 + $0x170] sm:$0xff]
                  %1176 = vst [vmem:[%s1082 + $0x170] sm:$0xff] %v1175
                  %v1177 = vld [vmem:[%s1081 + $0x178] sm:$0xff]
                  %1178 = vst [vmem:[%s1082 + $0x178] sm:$0xff] %v1177
                  %v1179 = vld [vmem:[%s1081 + $0x180] sm:$0xff]
                  %1180 = vst [vmem:[%s1082 + $0x180] sm:$0xff] %v1179
                  %v1181 = vld [vmem:[%s1081 + $0x188] sm:$0xff]
                  %1182 = vst [vmem:[%s1082 + $0x188] sm:$0xff] %v1181
                  %v1183 = vld [vmem:[%s1081 + $0x190] sm:$0xff]
                  %1184 = vst [vmem:[%s1082 + $0x190] sm:$0xff] %v1183
                  %v1185 = vld [vmem:[%s1081 + $0x198] sm:$0xff]
                  %1186 = vst [vmem:[%s1082 + $0x198] sm:$0xff] %v1185
                  %v1187 = vld [vmem:[%s1081 + $0x1a0] sm:$0xff]
                  %1188 = vst [vmem:[%s1082 + $0x1a0] sm:$0xff] %v1187
                  %v1189 = vld [vmem:[%s1081 + $0x1a8] sm:$0xff]
                  %1190 = vst [vmem:[%s1082 + $0x1a8] sm:$0xff] %v1189
                  %v1191 = vld [vmem:[%s1081 + $0x1b0] sm:$0xff]
                  %1192 = vst [vmem:[%s1082 + $0x1b0] sm:$0xff] %v1191
                  %v1193 = vld [vmem:[%s1081 + $0x1b8] sm:$0xff]
                  %1194 = vst [vmem:[%s1082 + $0x1b8] sm:$0xff] %v1193
                  %v1195 = vld [vmem:[%s1081 + $0x1c0] sm:$0xff]
                  %1196 = vst [vmem:[%s1082 + $0x1c0] sm:$0xff] %v1195
                  %v1197 = vld [vmem:[%s1081 + $0x1c8] sm:$0xff]
                  %1198 = vst [vmem:[%s1082 + $0x1c8] sm:$0xff] %v1197
                  %v1199 = vld [vmem:[%s1081 + $0x1d0] sm:$0xff]
                  %1200 = vst [vmem:[%s1082 + $0x1d0] sm:$0xff] %v1199
                  %v1201 = vld [vmem:[%s1081 + $0x1d8] sm:$0xff]
                  %1202 = vst [vmem:[%s1082 + $0x1d8] sm:$0xff] %v1201
                  %v1203 = vld [vmem:[%s1081 + $0x1e0] sm:$0xff]
                  %1204 = vst [vmem:[%s1082 + $0x1e0] sm:$0xff] %v1203
                  %v1205 = vld [vmem:[%s1081 + $0x1e8] sm:$0xff]
                  %1206 = vst [vmem:[%s1082 + $0x1e8] sm:$0xff] %v1205
                  %v1207 = vld [vmem:[%s1081 + $0x1f0] sm:$0xff]
                  %1208 = vst [vmem:[%s1082 + $0x1f0] sm:$0xff] %v1207
                  %v1209 = vld [vmem:[%s1081 + $0x1f8] sm:$0xff]
                  %1210 = vst [vmem:[%s1082 + $0x1f8] sm:$0xff] %v1209
                  %s1211 = sadd.s32 1, %s1080
                  %p1212 = scmp.ge.s32.totalorder %s1211, %s1071
                  %s1213 = scalar_select %p1212, 0, %s1211
                  %s1214 = smul.u32 %s1213, 512
                  %s1215 = smul.u32 %s1213, 512
                  %s1216 = scalar_lea.vmem %s845, %s1214 [#allocation2]
                  %s1217 = scalar_lea.vmem %s856, %s1215
                $region82: #{model_forward.1} parent=76 // loop_footer
                  %s1077 = sadd.s32 %s1075, 1
                $region83: #{model_forward.1} parent=76 // loop_footer_branch
                  %1074 = sbr.rel target = $region79
                $region84: #{model_forward.1} parent=76 // loop_exit
                  _
                %s1218 = sshrl.u32 %s1070, 6
                %s1219 = sand.u32 %s1070, 63
                %s1220 = smul.u32 %s1218, 64
                %s1221 = smul.u32 128, %s1220
                %s1222 = sshra.s32 %s1221, 4
                %s1223 = scalar_lea.vmem %s845, %s1222 [#allocation2]
                %s1224 = smul.u32 128, %s1220
                %s1225 = sshra.s32 %s1224, 4
                %s1226 = scalar_lea.vmem %s856, %s1225
                // While loop
                $region85: #{model_forward.1} parent=76 // loop_pre_header
                  _
                $region86: #{model_forward.1} parent=76 // loop_header
                  %s1230 = sphi 0, %s1232
                  %p1231 = scmp.ge.s32.totalorder %s1230, %s1219
                  %s1235 = sphi 0, %s1242
                  %s1236 = sphi %s1223, %s1245
                  %s1237 = sphi %s1226, %s1246
                $region87: #{model_forward.1} parent=76 // loop_header_branch
                  %1234 = sbr.rel (%p1231) target = $region91
                $region88: #{model_forward.1} parent=76 // loop_body
                  %v1238 = vld [vmem:[%s1236] sm:$0xff]
                  %1239 = vst [vmem:[%s1237] sm:$0xff] %v1238
                  %s1240 = sadd.s32 1, %s1235
                  %p1241 = scmp.ge.s32.totalorder %s1240, %s1219
                  %s1242 = scalar_select %p1241, 0, %s1240
                  %s1243 = smul.u32 %s1242, 8
                  %s1244 = smul.u32 %s1242, 8
                  %s1245 = scalar_lea.vmem %s1223, %s1243 [#allocation2]
                  %s1246 = scalar_lea.vmem %s1226, %s1244
                $region89: #{model_forward.1} parent=76 // loop_footer
                  %s1232 = sadd.s32 %s1230, 1
                $region90: #{model_forward.1} parent=76 // loop_footer_branch
                  %1229 = sbr.rel target = $region86
                $region91: #{model_forward.1} parent=76 // loop_exit
                  _
                %s1247 = sshll.u32 1, %s1065
                %s1248 = ssub.s32 %s1247, 1
                loop: start=0, step=1, limit=1
                $region92: #{model_forward.1} parent=76 // loop_pre_header
                  _
                $region93: #{model_forward.1} parent=76 // loop_header
                  %s1250 = sphi 0, %s1254
                  %p1251 = scmp.ge.s32.totalorder %s1250, 1
                  %s1255 = sphi %s1067, %s1067
                  %s1256 = sphi %s1069, %s1069
                $region94: #{model_forward.1} parent=76 // loop_header_branch
                  %1253 = sbr.rel (%p1251) target = $region98
                $region95: #{model_forward.1} parent=76 // loop_body
                  %v1257 = vld [vmem:[%s1255] sm:%s1248]
                  %1258 = vst [vmem:[%s1256] sm:%s1248] %v1257
                $region96: #{model_forward.1} parent=76 // loop_footer
                  %s1254 = sadd.s32 1, %s1250
                $region97: #{model_forward.1} parent=76 // loop_footer_branch
                  %1249 = sbr.rel target = $region93
                $region98: #{model_forward.1} parent=76 // loop_exit
                  _
              $region77: #{model_forward.1} parent=43 // pred_fallthru
                _
            $region44: #{model_forward.1} parent=39 // pred_fallthru
              _
            // Predicated region
            $region45: #{model_forward.1} parent=39 // pred_check
              %p865 = pneg %p861
            $region46: #{model_forward.1} parent=39 // pred_check_branch
              %867 = sbr.rel (%p865) target = $region48
            $region47: #{model_forward.1} parent=39 // pred_region
              %s868 = sshll.u32 1, %s857
              %s869 = ssub.s32 %s868, 1
              loop: start=0, step=1, limit=1
              $region49: #{model_forward.1} parent=47 // loop_pre_header
                _
              $region50: #{model_forward.1} parent=47 // loop_header
                %s871 = sphi 0, %s875
                %p872 = scmp.ge.s32.totalorder %s871, 1
                %s876 = sphi %s845, %s845
                %s877 = sphi %s856, %s856
              $region51: #{model_forward.1} parent=47 // loop_header_branch
                %874 = sbr.rel (%p872) target = $region55
              $region52: #{model_forward.1} parent=47 // loop_body
                %v878 = vld [vmem:[%s876] sm:%s869]
                %879 = vst [vmem:[%s877] sm:%s869] %v878
              $region53: #{model_forward.1} parent=47 // loop_footer
                %s875 = sadd.s32 1, %s871
              $region54: #{model_forward.1} parent=47 // loop_footer_branch
                %870 = sbr.rel target = $region50
              $region55: #{model_forward.1} parent=47 // loop_exit
                _
            $region48: #{model_forward.1} parent=39 // pred_fallthru
              _
          $region40: #{model_forward.1} parent=35 // pred_fallthru
            _
          %1259 = vnop
        $region36: #{model_forward.1} parent=31 // pred_fallthru
          _
      $region32: #{model_forward.1} parent=5 // pred_fallthru
        _
      %p1260 = scmp.le.s32.totalorder 2, %s9
      // Predicated region
      $region99: #{model_forward.1} parent=5 // pred_check
        %p1261 = pneg %p1260
      $region100: #{model_forward.1} parent=5 // pred_check_branch
        %1263 = sbr.rel (%p1261) target = $region102
      $region101: #{model_forward.1} parent=5 // pred_region
        %s1264 = ssub.s32 %s9, 2
        // Predicated region
        $region103: #{model_forward.1} parent=101 // pred_check
          %p1265 = pneg %p106
        $region104: #{model_forward.1} parent=101 // pred_check_branch
          %1267 = sbr.rel (%p1265) target = $region106
        $region105: #{model_forward.1} parent=101 // pred_region
          %s1268 = sand.u32 %s91, 1
          %s1269 = sand.u32 %s91, 1
          %s1270 = smul.addr %s1269, 144
          %s1271 = scalar_lea.vmem [#allocation2], %s1270
        $region106: #{model_forward.1} parent=101 // pred_fallthru
          _
      $region102: #{model_forward.1} parent=5 // pred_fallthru
        _
    $region6: #{model_forward.1} parent=1 // loop_footer
      %s13 = sadd.s32 1, %s9
    $region7: #{model_forward.1} parent=1 // loop_footer_branch
      %8 = sbr.rel target = $region3
    $region8: #{model_forward.1} parent=1 // loop_exit
      _

</llo_original>
